<compile_context>
chip_gen: v5e
topology: v5e:2x2
jax: 0.10.0
libtpu: 0.0.40
codegen_flags: <defaults>
</compile_context>

<pallas_src>
import math

import jax
import jax.numpy as jnp
from jax.experimental import pallas as pl
from jax.experimental.pallas import tpu as pltpu


def _exp01_kernel(z_ref, o_ref):
    # 1 VPU mul + 1 EUP exp + 1 VPU mul-add per element; DMA is the bottleneck.
    z = z_ref[...].astype(jnp.float32)
    o_ref[...] = (0.5 * jnp.exp(-(z * z)) + 0.5).astype(o_ref.dtype)


def _choose_slab(n: int):
    """Factor n = rows * lanes for a metadata-only reshape to a 2-D slab.

    Prefers the widest lane dim <= 65536 that is a multiple of 128 (unmasked,
    lane-dense stores); otherwise the widest divisor >= 128 (full-extent lane
    dim, only the 128-lane edge is masked); otherwise (1, n).
    """
    best128 = best_any = None
    for i in range(1, math.isqrt(n) + 1):
        if n % i:
            continue
        for c in (i, n // i):
            if 128 <= c <= 65536:
                if best_any is None or c > best_any:
                    best_any = c
                if c % 128 == 0 and (best128 is None or c > best128):
                    best128 = c
    lanes = best128 if best128 is not None else best_any
    if lanes is None:
        return 1, n
    return n // lanes, lanes


def _pick_tile_rows(rows, lanes, itemsize, target_block_bytes):
    """Rows per block: sublane-pack aligned; prefer an even count of equal blocks."""
    pack = max(8, 32 // max(1, itemsize))         # f32 -> 8, bf16 -> 16, i8/fp8 -> 32
    tgt = max(1, target_block_bytes // (lanes * itemsize))
    tgt = max(pack, (tgt // pack) * pack)
    if rows <= tgt:
        return rows                               # single full-extent block
    best_even = best_div = None
    for d in range(pack, tgt + 1, pack):
        if rows % d == 0:
            best_div = d
            if (rows // d) % 2 == 0:
                best_even = d                     # even # of equal blocks (2-TC friendly)
    if best_even is not None:
        return best_even
    if best_div is not None:
        return best_div
    return tgt                                    # ragged last block, masked by Pallas


def exp01(z, *, target_block_bytes=4 * 1024 * 1024, donate=False):
    """Elementwise 0.5 * exp(-z**2) + 0.5 for any shape / float dtype."""
    orig_shape = z.shape
    dtype = z.dtype
    n = z.size
    if n == 0:
        return z
    itemsize = jnp.dtype(dtype).itemsize

    rows, lanes = _choose_slab(n)
    z2d = jnp.reshape(z, (rows, lanes))           # metadata-only; never a pad/copy

    if rows > 1:
        tile_rows = _pick_tile_rows(rows, lanes, itemsize, target_block_bytes)
        block = (tile_rows, lanes)
        grid = (pl.cdiv(rows, tile_rows),)
        index_map = lambda i: (i, 0)
    else:
        # (1, n) slab (n small or had no usable factor): block the lane dim.
        # Conservative width: assume up to 8x sublane padding for 1-row blocks.
        tile_cols = max(128, (target_block_bytes // (8 * itemsize)) // 128 * 128)
        if lanes <= tile_cols:
            block = (1, lanes)
            grid = (1,)
            index_map = lambda i: (0, 0)
        else:
            block = (1, tile_cols)
            grid = (pl.cdiv(lanes, tile_cols),)   # ragged last block masked by Pallas
            index_map = lambda i: (0, i)

    # Explicit VMEM budget: double-buffered in + out, padded to (8,128) layout,
    # plus headroom; capped at 48 MiB (fits v7x's 64 MiB physical VMEM, lifts
    # v5e's 16 MiB scoped default when needed).
    padded_block_bytes = ((-(-block[0] // 8) * 8) *
                          (-(-block[1] // 128) * 128) * itemsize)
    vmem_limit = int(min(48 * 2**20, max(16 * 2**20, 6 * padded_block_bytes)))

    out2d = pl.pallas_call(
        _exp01_kernel,
        out_shape=jax.ShapeDtypeStruct((rows, lanes), dtype),
        grid_spec=pltpu.PrefetchScalarGridSpec(
            num_scalar_prefetch=0,
            grid=grid,
            in_specs=[pl.BlockSpec(block, index_map)],
            out_specs=pl.BlockSpec(block, index_map),
        ),
        # "parallel" lets multi-TensorCore parts shard the grid axis; the even
        # block counts chosen above keep v7x's two cores balanced.
        # (pltpu.CORE_PARALLEL is a further v7x-only knob; kept portable here.)
        compiler_params=pltpu.CompilerParams(
            dimension_semantics=("parallel",),
            vmem_limit_bytes=vmem_limit,
        ),
        input_output_aliases=({0: 0} if donate else {}),
    )(z2d)

    return out2d.reshape(orig_shape)


if __name__ == "__main__":
    key = jax.random.PRNGKey(0)
    k0, k1, k2, k3, k4 = jax.random.split(key, 5)

    exp01_jit = jax.jit(exp01)

    # Small NCHW-like tensor.
    x = jax.random.normal(k0, (2, 4, 16, 16), dtype=jnp.float32)
    y = jax.block_until_ready(exp01_jit(x))
    y_ref = 0.5 * jnp.exp(-(x ** 2)) + 0.5
    assert y.shape == x.shape and y.dtype == x.dtype
    assert jnp.allclose(y, y_ref, atol=1e-6, rtol=1e-6)
    assert float(jnp.min(y)) >= 0.5 and float(jnp.max(y)) <= 1.0

    # Scalar parameter (how Exp_01 is used as a parametrization in LipschitzRNN).
    s = jax.random.normal(k1, (), dtype=jnp.float32)
    ys = jax.block_until_ready(exp01(s))
    assert ys.shape == ()
    assert jnp.allclose(ys, 0.5 * jnp.exp(-(s ** 2)) + 0.5, atol=1e-6)

    # bf16: dtype stays on the wire, f32 compute inside the kernel.
    xb = jax.random.normal(k2, (8, 256), dtype=jnp.bfloat16)
    yb = jax.block_until_ready(exp01(xb))
    yb_ref = (0.5 * jnp.exp(-(xb.astype(jnp.float32) ** 2)) + 0.5).astype(jnp.bfloat16)
    assert yb.dtype == jnp.bfloat16
    assert jnp.allclose(yb.astype(jnp.float32), yb_ref.astype(jnp.float32),
                        atol=1e-2, rtol=1e-2)

    # Awkward size (no 128 divisor): zero-copy full-extent lane path, no pad/slice.
    xo = jax.random.normal(k3, (3, 5, 7, 11), dtype=jnp.float32)
    yo = jax.block_until_ready(exp01(xo))
    assert yo.shape == xo.shape
    assert jnp.allclose(yo, 0.5 * jnp.exp(-(xo ** 2)) + 0.5, atol=1e-6, rtol=1e-6)

    # Gridded path (even number of equal ~4 MiB blocks) + donated input buffer.
    xg = jax.random.normal(k4, (256, 8192), dtype=jnp.float32)
    yg_ref = 0.5 * jnp.exp(-(xg ** 2)) + 0.5
    yg = jax.block_until_ready(
        jax.jit(lambda a: exp01(a, donate=True), donate_argnums=0)(xg))
    assert jnp.allclose(yg, yg_ref, atol=1e-6, rtol=1e-6)

    print("KERNEL_OK")
</pallas_src>

<mosaic_0001>
module attributes {stable_mosaic.version = 11 : i64} {
  func.func @_exp01_kernel(%arg0: i32, %arg1: memref<1x2048xf32, #tpu.memory_space<vmem>>, %arg2: memref<1x2048xf32, #tpu.memory_space<vmem>>) attributes {dimension_semantics = [#tpu.dimension_semantics<parallel>], iteration_bounds = array<i64: 1>, scalar_prefetch = 0 : i64, scratch_operands = 0 : i64, tpu.core_type = #tpu.core_type<tc>, window_params = [{pipeline_mode = #tpu.pipeline_mode<synchronous>, transform_indices = @transform_0, window_bounds = array<i64: 1, 2048>}, {pipeline_mode = #tpu.pipeline_mode<synchronous>, transform_indices = @transform_1, window_bounds = array<i64: 1, 2048>}]} {
    %c0 = arith.constant 0 : index
    %c0_0 = arith.constant 0 : index
    %0 = vector.load %arg1[%c0, %c0_0] : memref<1x2048xf32, #tpu.memory_space<vmem>>, vector<1x2048xf32>
    %1 = arith.mulf %0, %0 : vector<1x2048xf32>
    %cst = arith.constant 0.000000e+00 : f32
    %2 = vector.broadcast %cst : f32 to vector<1x2048xf32>
    %3 = arith.subf %2, %1 : vector<1x2048xf32>
    %4 = math.exp %3 : vector<1x2048xf32>
    %cst_1 = arith.constant 5.000000e-01 : f32
    %5 = vector.broadcast %cst_1 : f32 to vector<1x2048xf32>
    %6 = arith.mulf %5, %4 : vector<1x2048xf32>
    %cst_2 = arith.constant 5.000000e-01 : f32
    %7 = vector.broadcast %cst_2 : f32 to vector<1x2048xf32>
    %8 = arith.addf %6, %7 : vector<1x2048xf32>
    %c0_3 = arith.constant 0 : index
    %c0_4 = arith.constant 0 : index
    %9 = vector.load %arg2[%c0_3, %c0_4] : memref<1x2048xf32, #tpu.memory_space<vmem>>, vector<1x2048xf32>
    tpu.vector_store %arg2[%c0_3, %c0_4], %8 {strides = array<i32>} : memref<1x2048xf32, #tpu.memory_space<vmem>>, vector<1x2048xf32>,
    return
  }
  func.func @transform_0(%arg0: i32) -> (i32, i32) {
    %c0_i32 = arith.constant 0 : i32
    %c0_i32_0 = arith.constant 0 : i32
    %c0_i32_1 = arith.constant 0 : i32
    return %c0_i32, %c0_i32_0 : i32, i32
  }
  func.func @transform_1(%arg0: i32) -> (i32, i32) {
    %c0_i32 = arith.constant 0 : i32
    %c0_i32_0 = arith.constant 0 : i32
    %c0_i32_1 = arith.constant 0 : i32
    return %c0_i32, %c0_i32_0 : i32, i32
  }
}

</mosaic_0001>

<llo_original>
// kernel: exp01.1
$region0: #{exp01.1}
  #allocation0 [shape = 'u32[]', space=smem, size = 0x4, offset = 0x4, fixed_abs, tag = 'smem constant byte address 0x4 - core index']
  #allocation1 [shape = 'u32[72,128]{1,0:T(1,128)}', space=vmem, size = 0x9000, scoped, tag = 'internal scratch']
  %s0 = inlined_call_operand.vmem [shape: f32[1,2048], index: 0, kind: input, shape index: {}]
  %s1 = inlined_call_operand.vmem [shape: f32[1,2048], index: 1, kind: output, shape index: {}]
  %s2 = sld [smem:[#allocation0]]
  $region14: #{exp01.1} parent=0
    _
  %s4 = ssub.s32 1, %s2
  %s5 = scalar_select 0, %s4, %s2
  // Predicated region
  $region2: #{exp01.1} parent=0 // pred_check
    _
  $region3: #{exp01.1} parent=0 // pred_check_branch
    %7 = sbr.rel (0) target = $region5
  $region4: #{exp01.1} parent=0 // pred_region
    _
  $region5: #{exp01.1} parent=0 // pred_fallthru
    _
  %v8 = vld [vmem:[%s0] sm:$0xff]
  %v9 = vld [vmem:[%s0 + $0x8] sm:$0xff]
  %v10 = vmul.f32 %v8, %v8
  %v11 = vmul.f32 %v9, %v9
  %v12 = vsub.f32 0.0, %v10
  %v13 = vsub.f32 0.0, %v11
  %v14 = vmul.f32 %v12, 1.442695
  %v15 = vpow.pop %v14
  %v16 = vmul.f32 %v13, 1.442695
  %v17 = vpow.pop %v16
  %v18 = vmul.f32 %v15, 0.5
  %v19 = vmul.f32 %v17, 0.5
  %v20 = vadd.f32 %v18, 0.5
  %v21 = vadd.f32 %v19, 0.5
  %22 = vst [vmem:[%s1] sm:$0xff] %v20
  %23 = vst [vmem:[%s1 + $0x8] sm:$0xff] %v21
  // Predicated region
  $region6: #{exp01.1} parent=0 // pred_check
    _
  $region7: #{exp01.1} parent=0 // pred_check_branch
    %25 = sbr.rel (0) target = $region9
  $region8: #{exp01.1} parent=0 // pred_region
    _
  $region9: #{exp01.1} parent=0 // pred_fallthru
    _
  // Predicated region
  $region10: #{exp01.1} parent=0 // pred_check
    _
  $region11: #{exp01.1} parent=0 // pred_check_branch
    %27 = sbr.rel (0) target = $region13
  $region12: #{exp01.1} parent=0 // pred_region
    _
  $region13: #{exp01.1} parent=0 // pred_fallthru
    _

</llo_original>
